<compile_context>
chip_gen: v6e
topology: v6e:2x2x1
jax: 0.10.0
libtpu: 0.0.40
codegen_flags: <defaults>
</compile_context>

<pallas_src>
import jax
import jax.numpy as jnp
from jax.experimental import pallas as pl
from jax.experimental.pallas import tpu as pltpu

LANE = 128


# --------------------------------------------------------------------------
# Kernels
# --------------------------------------------------------------------------
def _compute_giou(boxes_ref):
    """boxes_ref: (8, TM, 128) f32 VMEM block. Returns giou of shape (TM, 128)."""
    # Leading-axis indexing -> contiguous (TM, 128) sub-blocks (full vreg density).
    x_p1 = boxes_ref[0]
    y_p1 = boxes_ref[1]
    x_p2 = boxes_ref[2]
    y_p2 = boxes_ref[3]

    x_g1 = boxes_ref[4]
    y_g1 = boxes_ref[5]
    x_g2 = boxes_ref[6]
    y_g2 = boxes_ref[7]

    A_g = (x_g2 - x_g1) * (y_g2 - y_g1)
    A_p = (x_p2 - x_p1) * (y_p2 - y_p1)

    x_I1 = jnp.maximum(x_p1, x_g1)
    x_I2 = jnp.minimum(x_p2, x_g2)
    y_I1 = jnp.maximum(y_p1, y_g1)
    y_I2 = jnp.minimum(y_p2, y_g2)

    # Matches PyTorch exactly: clamp the *product*, not the per-axis widths.
    A_I = jnp.maximum((x_I2 - x_I1) * (y_I2 - y_I1), 0.0)
    A_U = A_g + A_p - A_I

    # Enclosing box = elementwise min/max of the two boxes (as in PyTorch).
    min_x1 = jnp.minimum(x_p1, x_g1)
    min_y1 = jnp.minimum(y_p1, y_g1)
    max_x2 = jnp.maximum(x_p2, x_g2)
    max_y2 = jnp.maximum(y_p2, y_g2)
    A_C = (max_x2 - min_x1) * (max_y2 - min_y1)

    # Exact divides (degenerate boxes -> NaN/Inf, mirroring PyTorch).
    iou = A_I / A_U
    giou = iou - (A_C - A_U) / A_C
    return giou


def _giou_sum_kernel(boxes_ref, loss_ref):
    # boxes_ref: (8, TM, 128) f32;  loss_ref: (1, 128) per-tile per-lane partials.
    giou = _compute_giou(boxes_ref)                      # (TM, 128)
    loss_ref[...] = jnp.sum(1.0 - giou, axis=0, keepdims=True)


def _giou_arr_kernel(boxes_ref, giou_ref):
    # boxes_ref: (8, TM, 128) f32;  giou_ref: (TM, 128) f32 (sublane-dense).
    giou_ref[...] = _compute_giou(boxes_ref)


# --------------------------------------------------------------------------
# Wrapper
# --------------------------------------------------------------------------
def _round_up(x, m):
    return ((x + m - 1) // m) * m


def _choose_tiling(m_total, tile_rows):
    """Pick (tm, m_pad): tm = sublane rows per tile, m_pad = padded row count."""
    if m_total < 8:
        # Tiny problem: single block covering the whole (padded) extent.
        return m_total, m_total
    if m_total < 16:
        tm = 8
        return tm, _round_up(m_total, tm)
    # Core-aware cap: guarantee >= 2 grid tiles (feeds both TCs on v7x),
    # tile rows a multiple of 8 for dense (8,128) sublane tiling.
    tm = min(int(tile_rows), _round_up(pl.cdiv(m_total, 2), 8))
    tm = max(tm, 8)
    return tm, _round_up(m_total, tm)


def _pack_boxes(input_boxes, target_boxes, n_pad):
    """Pack (N,4)+(N,4) -> (8, n_pad//128, 128), padding with unit boxes."""
    n = input_boxes.shape[0]
    packed = jnp.concatenate([input_boxes.T, target_boxes.T], axis=0)  # (8, N)
    if n_pad > n:
        # Identical unit boxes: giou == 1 -> loss contribution == 0, no NaNs.
        pad_col = jnp.array([0.0, 0.0, 1.0, 1.0, 0.0, 0.0, 1.0, 1.0],
                            jnp.float32).reshape(8, 1)
        packed = jnp.concatenate(
            [packed, jnp.broadcast_to(pad_col, (8, n_pad - n))], axis=1)
    return packed.reshape(8, n_pad // LANE, LANE)


def giou_loss(input_boxes, target_boxes, return_giou_arr=False, tile_rows=512):
    """input_boxes, target_boxes: (N, 4) or (4,) arrays (PyTorch layout).

    tile_rows: sublane rows per grid tile; each tile covers tile_rows*128 boxes
    (default 512 -> 65536 boxes, 2 MiB input block, ~4 MiB double-buffered).
    """
    input_boxes = jnp.asarray(input_boxes, jnp.float32)
    target_boxes = jnp.asarray(target_boxes, jnp.float32)
    if input_boxes.ndim == 1:
        input_boxes = input_boxes[None, :]
    if target_boxes.ndim == 1:
        target_boxes = target_boxes[None, :]

    n = input_boxes.shape[0]
    m_total = pl.cdiv(n, LANE)                 # sublane rows of lane-dense boxes
    tm, m_pad = _choose_tiling(m_total, tile_rows)
    n_pad = m_pad * LANE
    num_tiles = m_pad // tm

    packed = _pack_boxes(input_boxes, target_boxes, n_pad)  # (8, m_pad, 128)

    compiler_params = pltpu.CompilerParams(
        dimension_semantics=("parallel",))     # v7x: shard tiles across both TCs

    in_specs = [pl.BlockSpec((8, tm, LANE), lambda i: (0, i, 0))]

    if return_giou_arr:
        giou_padded = pl.pallas_call(
            _giou_arr_kernel,
            out_shape=jax.ShapeDtypeStruct((m_pad, LANE), jnp.float32),
            grid=(num_tiles,),
            in_specs=in_specs,
            out_specs=pl.BlockSpec((tm, LANE), lambda i: (i, 0)),
            compiler_params=compiler_params,
        )(packed)
        return giou_padded.reshape(-1)[:n]

    # Default path: per-tile per-lane partial sums only; tiny HBM writeback.
    partials = pl.pallas_call(
        _giou_sum_kernel,
        out_shape=jax.ShapeDtypeStruct((1, num_tiles * LANE), jnp.float32),
        grid=(num_tiles,),
        in_specs=in_specs,
        out_specs=pl.BlockSpec((1, LANE), lambda i: (0, i)),
        compiler_params=compiler_params,
    )(packed)
    return jnp.sum(partials)


class GIOULoss:
    """Mirror of the PyTorch module's forward()."""

    def __init__(self, return_giou_arr=False, tile_rows=512):
        self.return_giou_arr = return_giou_arr
        self.tile_rows = tile_rows

    def __call__(self, input_boxes, target_boxes):
        return giou_loss(input_boxes, target_boxes,
                         return_giou_arr=self.return_giou_arr,
                         tile_rows=self.tile_rows)


# --------------------------------------------------------------------------
# Pure-JAX reference (mirrors the PyTorch forward)
# --------------------------------------------------------------------------
def _giou_ref(input_boxes, target_boxes):
    x_p1, x_p2, y_p1, y_p2 = (input_boxes[:, 0], input_boxes[:, 2],
                              input_boxes[:, 1], input_boxes[:, 3])
    x_g1, x_g2, y_g1, y_g2 = (target_boxes[:, 0], target_boxes[:, 2],
                              target_boxes[:, 1], target_boxes[:, 3])
    A_g = (x_g2 - x_g1) * (y_g2 - y_g1)
    A_p = (x_p2 - x_p1) * (y_p2 - y_p1)
    x_I1, x_I2 = jnp.maximum(x_p1, x_g1), jnp.minimum(x_p2, x_g2)
    y_I1, y_I2 = jnp.maximum(y_p1, y_g1), jnp.minimum(y_p2, y_g2)
    A_I = jnp.clip((x_I2 - x_I1) * (y_I2 - y_I1), 0.0)
    A_U = A_g + A_p - A_I
    min_box = jnp.minimum(input_boxes, target_boxes)
    max_box = jnp.maximum(input_boxes, target_boxes)
    A_C = (max_box[:, 2] - min_box[:, 0]) * (max_box[:, 3] - min_box[:, 1])
    iou = A_I / A_U
    return iou - (A_C - A_U) / A_C


def _giou_loss_ref(input_boxes, target_boxes):
    return jnp.sum(1.0 - _giou_ref(input_boxes, target_boxes))


# --------------------------------------------------------------------------
# Test
# --------------------------------------------------------------------------
def _make_boxes(key, n):
    k1, k2 = jax.random.split(key)
    base = jax.random.uniform(k1, (n, 2), jnp.float32, 0.0, 5.0)
    wh = jax.random.uniform(k2, (n, 2), jnp.float32, 0.5, 3.0)
    return jnp.concatenate([base, base + wh], axis=1)  # (n, 4): x1,y1,x2,y2


if __name__ == "__main__":
    key = jax.random.PRNGKey(0)
    k_in, k_tg, k_in2, k_tg2 = jax.random.split(key, 4)

    giou_loss_jit = jax.jit(
        giou_loss, static_argnames=("return_giou_arr", "tile_rows"))

    # --- Small case: N = 8 boxes, single (8,1,128) tile ----------------------
    N = 8
    input_boxes = _make_boxes(k_in, N)
    target_boxes = _make_boxes(k_tg, N)

    loss = giou_loss_jit(input_boxes, target_boxes)
    jax.block_until_ready(loss)
    ref = _giou_loss_ref(input_boxes, target_boxes)
    assert jnp.allclose(loss, ref, rtol=1e-4, atol=1e-5), (loss, ref)

    giou_arr = giou_loss_jit(input_boxes, target_boxes, return_giou_arr=True)
    jax.block_until_ready(giou_arr)
    giou_arr_ref = _giou_ref(input_boxes, target_boxes)
    assert giou_arr.shape == (N,)
    assert jnp.allclose(giou_arr, giou_arr_ref, rtol=1e-5, atol=1e-5)

    # --- Multi-tile + padding: N = 2500 -> M=20 rows -> 2 tiles (default) ----
    N2 = 2500
    input_boxes2 = _make_boxes(k_in2, N2)
    target_boxes2 = _make_boxes(k_tg2, N2)
    ref2_loss = _giou_loss_ref(input_boxes2, target_boxes2)
    ref2_arr = _giou_ref(input_boxes2, target_boxes2)

    loss2 = giou_loss_jit(input_boxes2, target_boxes2)
    jax.block_until_ready(loss2)
    assert jnp.allclose(loss2, ref2_loss, rtol=1e-4, atol=1e-4), (loss2, ref2_loss)

    giou_arr2 = giou_loss_jit(input_boxes2, target_boxes2, return_giou_arr=True)
    jax.block_until_ready(giou_arr2)
    assert giou_arr2.shape == (N2,)
    assert jnp.allclose(giou_arr2, ref2_arr, rtol=1e-5, atol=1e-5)

    # --- Force a 3-tile grid (tile_rows=8) to exercise the grid path ---------
    loss3 = giou_loss_jit(input_boxes2, target_boxes2, tile_rows=8)
    jax.block_until_ready(loss3)
    assert jnp.allclose(loss3, ref2_loss, rtol=1e-4, atol=1e-4), (loss3, ref2_loss)

    giou_arr3 = giou_loss_jit(input_boxes2, target_boxes2,
                              return_giou_arr=True, tile_rows=8)
    jax.block_until_ready(giou_arr3)
    assert jnp.allclose(giou_arr3, ref2_arr, rtol=1e-5, atol=1e-5)

    print("KERNEL_OK")
</pallas_src>

<mosaic_0001>
module attributes {stable_mosaic.version = 11 : i64} {
  func.func @_giou_sum_kernel(%arg0: i32, %arg1: memref<8x1x128xf32, #tpu.memory_space<vmem>>, %arg2: memref<1x128xf32, #tpu.memory_space<vmem>>) attributes {dimension_semantics = [#tpu.dimension_semantics<parallel>], iteration_bounds = array<i64: 1>, scalar_prefetch = 0 : i64, scratch_operands = 0 : i64, tpu.core_type = #tpu.core_type<tc>, window_params = [{transform_indices = @transform_0, window_bounds = array<i64: 8, 1, 128>}, {transform_indices = @transform_1, window_bounds = array<i64: 1, 128>}]} {
    %c0 = arith.constant 0 : index
    %c0_0 = arith.constant 0 : index
    %c0_1 = arith.constant 0 : index
    %0 = vector.load %arg1[%c0, %c0_0, %c0_1] : memref<8x1x128xf32, #tpu.memory_space<vmem>>, vector<1x1x128xf32>
    %1 = vector.shape_cast %0 : vector<1x1x128xf32> to vector<1x128xf32>
    %c1 = arith.constant 1 : index
    %c0_2 = arith.constant 0 : index
    %c0_3 = arith.constant 0 : index
    %2 = vector.load %arg1[%c1, %c0_2, %c0_3] : memref<8x1x128xf32, #tpu.memory_space<vmem>>, vector<1x1x128xf32>
    %3 = vector.shape_cast %2 : vector<1x1x128xf32> to vector<1x128xf32>
    %c2 = arith.constant 2 : index
    %c0_4 = arith.constant 0 : index
    %c0_5 = arith.constant 0 : index
    %4 = vector.load %arg1[%c2, %c0_4, %c0_5] : memref<8x1x128xf32, #tpu.memory_space<vmem>>, vector<1x1x128xf32>
    %5 = vector.shape_cast %4 : vector<1x1x128xf32> to vector<1x128xf32>
    %c3 = arith.constant 3 : index
    %c0_6 = arith.constant 0 : index
    %c0_7 = arith.constant 0 : index
    %6 = vector.load %arg1[%c3, %c0_6, %c0_7] : memref<8x1x128xf32, #tpu.memory_space<vmem>>, vector<1x1x128xf32>
    %7 = vector.shape_cast %6 : vector<1x1x128xf32> to vector<1x128xf32>
    %c4 = arith.constant 4 : index
    %c0_8 = arith.constant 0 : index
    %c0_9 = arith.constant 0 : index
    %8 = vector.load %arg1[%c4, %c0_8, %c0_9] : memref<8x1x128xf32, #tpu.memory_space<vmem>>, vector<1x1x128xf32>
    %9 = vector.shape_cast %8 : vector<1x1x128xf32> to vector<1x128xf32>
    %c5 = arith.constant 5 : index
    %c0_10 = arith.constant 0 : index
    %c0_11 = arith.constant 0 : index
    %10 = vector.load %arg1[%c5, %c0_10, %c0_11] : memref<8x1x128xf32, #tpu.memory_space<vmem>>, vector<1x1x128xf32>
    %11 = vector.shape_cast %10 : vector<1x1x128xf32> to vector<1x128xf32>
    %c6 = arith.constant 6 : index
    %c0_12 = arith.constant 0 : index
    %c0_13 = arith.constant 0 : index
    %12 = vector.load %arg1[%c6, %c0_12, %c0_13] : memref<8x1x128xf32, #tpu.memory_space<vmem>>, vector<1x1x128xf32>
    %13 = vector.shape_cast %12 : vector<1x1x128xf32> to vector<1x128xf32>
    %c7 = arith.constant 7 : index
    %c0_14 = arith.constant 0 : index
    %c0_15 = arith.constant 0 : index
    %14 = vector.load %arg1[%c7, %c0_14, %c0_15] : memref<8x1x128xf32, #tpu.memory_space<vmem>>, vector<1x1x128xf32>
    %15 = vector.shape_cast %14 : vector<1x1x128xf32> to vector<1x128xf32>
    %16 = arith.subf %13, %9 : vector<1x128xf32>
    %17 = arith.subf %15, %11 : vector<1x128xf32>
    %18 = arith.mulf %16, %17 : vector<1x128xf32>
    %19 = arith.subf %5, %1 : vector<1x128xf32>
    %20 = arith.subf %7, %3 : vector<1x128xf32>
    %21 = arith.mulf %19, %20 : vector<1x128xf32>
    %22 = arith.maximumf %1, %9 : vector<1x128xf32>
    %23 = arith.minimumf %5, %13 : vector<1x128xf32>
    %24 = arith.maximumf %3, %11 : vector<1x128xf32>
    %25 = arith.minimumf %7, %15 : vector<1x128xf32>
    %26 = arith.subf %23, %22 : vector<1x128xf32>
    %27 = arith.subf %25, %24 : vector<1x128xf32>
    %28 = arith.mulf %26, %27 : vector<1x128xf32>
    %cst = arith.constant 0.000000e+00 : f32
    %29 = vector.broadcast %cst : f32 to vector<1x128xf32>
    %30 = arith.maximumf %28, %29 : vector<1x128xf32>
    %31 = arith.addf %18, %21 : vector<1x128xf32>
    %32 = arith.subf %31, %30 : vector<1x128xf32>
    %33 = arith.minimumf %1, %9 : vector<1x128xf32>
    %34 = arith.minimumf %3, %11 : vector<1x128xf32>
    %35 = arith.maximumf %5, %13 : vector<1x128xf32>
    %36 = arith.maximumf %7, %15 : vector<1x128xf32>
    %37 = arith.subf %35, %33 : vector<1x128xf32>
    %38 = arith.subf %36, %34 : vector<1x128xf32>
    %39 = arith.mulf %37, %38 : vector<1x128xf32>
    %40 = arith.divf %30, %32 : vector<1x128xf32>
    %41 = arith.subf %39, %32 : vector<1x128xf32>
    %42 = arith.divf %41, %39 : vector<1x128xf32>
    %43 = arith.subf %40, %42 : vector<1x128xf32>
    %cst_16 = arith.constant 1.000000e+00 : f32
    %44 = vector.broadcast %cst_16 : f32 to vector<1x128xf32>
    %45 = arith.subf %44, %43 : vector<1x128xf32>
    %cst_17 = arith.constant dense<0.000000e+00> : vector<128xf32>
    %46 = vector.multi_reduction <add>, %45, %cst_17 [0] : vector<1x128xf32> to vector<128xf32>
    %47 = vector.shape_cast %46 : vector<128xf32> to vector<1x128xf32>
    %c0_18 = arith.constant 0 : index
    %c0_19 = arith.constant 0 : index
    %48 = vector.load %arg2[%c0_18, %c0_19] : memref<1x128xf32, #tpu.memory_space<vmem>>, vector<1x128xf32>
    tpu.vector_store %arg2[%c0_18, %c0_19], %47 {strides = array<i32>} : memref<1x128xf32, #tpu.memory_space<vmem>>, vector<1x128xf32>,
    return
  }
  func.func @transform_0(%arg0: i32) -> (i32, i32, i32) {
    %c0_i32 = arith.constant 0 : i32
    %c0_i32_0 = arith.constant 0 : i32
    %c0_i32_1 = arith.constant 0 : i32
    return %c0_i32, %arg0, %c0_i32_0 : i32, i32, i32
  }
  func.func @transform_1(%arg0: i32) -> (i32, i32) {
    %c0_i32 = arith.constant 0 : i32
    %c0_i32_0 = arith.constant 0 : i32
    return %c0_i32, %arg0 : i32, i32
  }
}

</mosaic_0001>

<llo_original>
// kernel: giou_loss.1
$region0: #{giou_loss.1}
  #allocation0 [shape = 'u32[]', space=smem, size = 0x4, offset = 0x4, fixed_abs, tag = 'smem constant byte address 0x4 - core index']
  #allocation1 [shape = 'u32[144,128]{1,0:T(1,128)}', space=vmem, size = 0x12000, scoped, tag = 'internal scratch']
  %s0 = inlined_call_operand.vmem [shape: f32[8,1,128], index: 0, kind: input, shape index: {}]
  %s1 = inlined_call_operand.vmem [shape: f32[1,128], index: 1, kind: output, shape index: {}]
  %s2 = sld [smem:[#allocation0]]
  $region14: #{giou_loss.1} parent=0
    _
  %s4 = ssub.s32 1, %s2
  %s5 = scalar_select 0, %s4, %s2
  // Predicated region
  $region2: #{giou_loss.1} parent=0 // pred_check
    _
  $region3: #{giou_loss.1} parent=0 // pred_check_branch
    %7 = sbr.rel (0) target = $region5
  $region4: #{giou_loss.1} parent=0 // pred_region
    _
  $region5: #{giou_loss.1} parent=0 // pred_fallthru
    _
  %v8 = vld [vmem:[%s0] sm:$0x1]
  %s9 = scalar_lea.vmem %s0, 1
  %v10 = vld [vmem:[%s9] sm:$0x1]
  %s11 = scalar_lea.vmem %s0, 2
  %v12 = vld [vmem:[%s11] sm:$0x1]
  %s13 = scalar_lea.vmem %s0, 3
  %v14 = vld [vmem:[%s13] sm:$0x1]
  %s15 = scalar_lea.vmem %s0, 4
  %v16 = vld [vmem:[%s15] sm:$0x1]
  %s17 = scalar_lea.vmem %s0, 5
  %v18 = vld [vmem:[%s17] sm:$0x1]
  %s19 = scalar_lea.vmem %s0, 6
  %v20 = vld [vmem:[%s19] sm:$0x1]
  %s21 = scalar_lea.vmem %s0, 7
  %v22 = vld [vmem:[%s21] sm:$0x1]
  %v23 = vsub.f32 %v20, %v16
  %v24 = vsub.f32 %v22, %v18
  %v25 = vmul.f32 %v23, %v24
  %v26 = vsub.f32 %v12, %v8
  %v27 = vsub.f32 %v14, %v10
  %v28 = vmul.f32 %v26, %v27
  %v29 = vmax.f32 %v8, %v16
  %v30 = vmin.f32 %v12, %v20
  %v31 = vmax.f32 %v10, %v18
  %v32 = vmin.f32 %v14, %v22
  %v33 = vsub.f32 %v30, %v29
  %v34 = vsub.f32 %v32, %v31
  %v35 = vmul.f32 %v33, %v34
  %v36 = vmax.f32 %v35, 0.0
  %v37 = vadd.f32 %v25, %v28
  %v38 = vsub.f32 %v37, %v36
  %v39 = vmin.f32 %v8, %v16
  %v40 = vmin.f32 %v10, %v18
  %v41 = vmax.f32 %v12, %v20
  %v42 = vmax.f32 %v14, %v22
  %v43 = vsub.f32 %v41, %v39
  %v44 = vsub.f32 %v42, %v40
  %v45 = vmul.f32 %v43, %v44
  %v46 = vrcp.pop %v38
  %v47 = vmul.f32 %v36, %v46
  %v48 = vsub.f32 %v45, %v38
  %v49 = vrcp.pop %v45
  %v50 = vmul.f32 %v48, %v49
  %v51 = vsub.f32 %v47, %v50
  %v52 = vsub.f32 1.0, %v51
  %v53 = vadd.f32 %v52, 0.0
  %54 = vst [vmem:[%s1] sm:$0x1] %v53
  // Predicated region
  $region6: #{giou_loss.1} parent=0 // pred_check
    _
  $region7: #{giou_loss.1} parent=0 // pred_check_branch
    %56 = sbr.rel (0) target = $region9
  $region8: #{giou_loss.1} parent=0 // pred_region
    _
  $region9: #{giou_loss.1} parent=0 // pred_fallthru
    _
  // Predicated region
  $region10: #{giou_loss.1} parent=0 // pred_check
    _
  $region11: #{giou_loss.1} parent=0 // pred_check_branch
    %58 = sbr.rel (0) target = $region13
  $region12: #{giou_loss.1} parent=0 // pred_region
    _
  $region13: #{giou_loss.1} parent=0 // pred_fallthru
    _

</llo_original>
